<compile_context>
chip_gen: v7x
topology: tpu7x:2x2x1
jax: 0.10.0
libtpu: 0.0.40
codegen_flags: <defaults>
</compile_context>

<pallas_src>
import jax
import jax.numpy as jnp
from jax import lax
from jax.experimental import pallas as pl
from jax.experimental.pallas import tpu as pltpu

# ---- small, module-consistent shapes ----
VOCAB = 50
MAX_LEN = 16          # max_len
EMB = 32              # embedding dim (emb_num)
HIDDEN = 32           # hidden_num
CLASS_NUM = 8         # class_num
B = 2                 # batch
KERNEL_SIZES = (2, 3, 4, 5)   # block1..block4 (fixed by the module)

K_MAX = max(KERNEL_SIZES)
NGROUPS = len(KERNEL_SIZES)
FEAT = NGROUPS * HIDDEN                 # 4*HIDDEN = 128  (one full lane width)
VB = 128                                # per-tap token block (one lane tile), >= VOCAB
KW = K_MAX * VB                         # 640 one-hot lanes, tap-major
CLS_PAD = 128                           # lane-dense logits store

# packed static-parameter buffer layout (all slice offsets/lengths 8-row aligned)
T_ROWS = KW                             # rows [0, 640)    : fused emb@conv table
WC_OFF = T_ROWS                         # rows [640, 768)  : classifier weight
BIAS_OFF = WC_OFF + FEAT                # rows [768, 776)  : row 768 conv bias, row 769 cls bias
MASK_OFF = BIAS_OFF + 8                 # rows [776, 792)  : position-validity mask
P_ROWS = MASK_OFF + MAX_LEN             # 792

assert KERNEL_SIZES == tuple(range(KERNEL_SIZES[0], KERNEL_SIZES[0] + NGROUPS))
assert VOCAB <= VB and FEAT == 128 and MAX_LEN % 8 == 0 and (B * MAX_LEN) % 8 == 0


def textcnn_kernel(ids_ref, params_ref, out_ref):
    """Fused TextCNN forward.

    ids_ref    : (B*MAX_LEN, K_MAX) int32 im2col token ids:
                 ids[b*MAX_LEN+p, i] = i*VB + token[b, p+i] for in-range taps,
                 -1 otherwise (matches no lane -> contributes zero).
    params_ref : (P_ROWS, 128) f32 packed static params (layout above).
    out_ref    : (B, CLS_PAD) f32 logits (class dim zero-padded).
    """
    n_rows = ids_ref.shape[0]                 # B * MAX_LEN (static)
    bsz = n_rows // MAX_LEN

    # ---- 1) im2col one-hot over (tap, token) lanes; ONE MXU matmul ----------
    ids = ids_ref[...]                                            # (R, K_MAX)
    lane = lax.broadcasted_iota(jnp.int32, (n_rows, KW), 1)       # (R, 640)
    hit = ids[:, 0:1] == lane                                     # tap 0
    for i in range(1, K_MAX):                                     # disjoint lane blocks
        hit = hit | (ids[:, i:i + 1] == lane)
    onehot = hit.astype(jnp.float32)                              # (R, 640)
    conv = jnp.dot(onehot, params_ref[0:T_ROWS, :],
                   preferred_element_type=jnp.float32)            # (R, FEAT)

    # ---- 2) bias + ReLU, mask invalid conv positions, max-pool over p -------
    bias_tile = params_ref[BIAS_OFF:BIAS_OFF + 8, :]               # aligned 8-row load
    a = jnp.maximum(conv + bias_tile[0:1, :], 0.0)                 # (R, FEAT)
    a3 = a.reshape(bsz, MAX_LEN, FEAT)                             # aligned reshape
    # ReLU output >= 0, so zero-masking invalid positions is equivalent to
    # excluding them from the max (every branch keeps >= 1 valid position).
    a3 = a3 * params_ref[MASK_OFF:MASK_OFF + MAX_LEN, :]
    feature = jnp.max(a3, axis=1)                                  # (B, FEAT)

    # ---- 3) classifier + single lane-dense store -----------------------------
    logits = jnp.dot(feature, params_ref[WC_OFF:WC_OFF + FEAT, :],
                     preferred_element_type=jnp.float32) + bias_tile[1:2, :]
    out_ref[...] = logits.astype(out_ref.dtype)


def pack_params(emb_matrix, conv_ws, conv_bs, wc, bc):
    """Fold embedding+conv into one table and pack ALL static params into a
    single (P_ROWS, 128) buffer.  Called ONCE at init (not per forward)."""
    emb_pad = jnp.zeros((VB, EMB), jnp.float32).at[:VOCAB, :].set(emb_matrix)
    w_stack = jnp.zeros((K_MAX, EMB, FEAT), jnp.float32)
    for g, (k, w) in enumerate(zip(KERNEL_SIZES, conv_ws)):
        w_stack = w_stack.at[:k, :, g * HIDDEN:(g + 1) * HIDDEN].set(w)
    # T[i*VB + v, :] = emb[v] @ w_stack[i]
    t_full = jnp.einsum('ve,ief->ivf', emb_pad, w_stack).reshape(KW, FEAT)

    b_conv = jnp.concatenate(conv_bs, axis=1)                      # (1, FEAT)
    wc_pad = jnp.zeros((FEAT, CLS_PAD), jnp.float32).at[:, :CLASS_NUM].set(wc)
    bc_pad = jnp.zeros((1, CLS_PAD), jnp.float32).at[:, :CLASS_NUM].set(bc)

    # branch g (kernel size g+2) is valid at positions p <= MAX_LEN - (g+2)
    p = jnp.arange(MAX_LEN)[:, None]
    g = (jnp.arange(FEAT) // HIDDEN)[None, :]
    mask = (p <= (MAX_LEN - KERNEL_SIZES[0]) - g).astype(jnp.float32)

    params = jnp.zeros((P_ROWS, 128), jnp.float32)
    params = params.at[0:T_ROWS, :].set(t_full)
    params = params.at[WC_OFF:WC_OFF + FEAT, :].set(wc_pad)
    params = params.at[BIAS_OFF, :].set(b_conv[0])
    params = params.at[BIAS_OFF + 1, :].set(bc_pad[0])
    params = params.at[MASK_OFF:MASK_OFF + MAX_LEN, :].set(mask)
    return params


@jax.jit
def textcnn_forward(batch_idx, params):
    """batch_idx: (B, MAX_LEN) int token ids.  Returns logits (B, CLASS_NUM)."""
    bsz = batch_idx.shape[0]
    tok = batch_idx.astype(jnp.int32)
    padded = jnp.full((bsz, MAX_LEN + K_MAX - 1), -1, jnp.int32)
    padded = padded.at[:, :MAX_LEN].set(tok)
    cols = []
    for i in range(K_MAX):
        t = padded[:, i:i + MAX_LEN]                               # token at position p+i
        cols.append(jnp.where(t >= 0, t + i * VB, -1))
    ids = jnp.stack(cols, axis=-1).reshape(bsz * MAX_LEN, K_MAX)   # (R, K_MAX) int32

    vspec = pl.BlockSpec(memory_space=pltpu.MemorySpace.VMEM)
    out = pl.pallas_call(
        textcnn_kernel,
        out_shape=jax.ShapeDtypeStruct((bsz, CLS_PAD), jnp.float32),
        in_specs=[vspec, vspec],
        out_specs=vspec,
    )(ids, params)
    return out[:, :CLASS_NUM]


def reference_forward(batch_idx, emb_matrix, conv_ws, conv_bs, wc, bc):
    """Pure-JAX reference matching the PyTorch forward semantics."""
    emb = emb_matrix[batch_idx]                          # (B, MAX_LEN, EMB)
    feats = []
    for k, w, bias in zip(KERNEL_SIZES, conv_ws, conv_bs):
        L = MAX_LEN - k + 1
        c = jnp.zeros((emb.shape[0], L, HIDDEN), jnp.float32)
        for i in range(k):
            c = c + jnp.einsum('ble,eh->blh', emb[:, i:i + L, :], w[i])
        a = jnp.maximum(c + bias[None, :, :], 0.0)       # ReLU
        feats.append(jnp.max(a, axis=1))                 # max-pool over positions
    feature = jnp.concatenate(feats, axis=1)             # (B, 4*HIDDEN)
    return feature @ wc + bc


if __name__ == "__main__":
    key = jax.random.PRNGKey(0)
    keys = jax.random.split(key, 2 + 2 * len(KERNEL_SIZES) + 2)

    batch_idx = jax.random.randint(keys[0], (B, MAX_LEN), 0, VOCAB)
    emb_matrix = jax.random.normal(keys[1], (VOCAB, EMB), jnp.float32) * 0.1

    conv_ws, conv_bs = [], []
    for j, k in enumerate(KERNEL_SIZES):
        conv_ws.append(
            jax.random.normal(keys[2 + 2 * j], (k, EMB, HIDDEN), jnp.float32) * 0.1)
        conv_bs.append(
            jax.random.normal(keys[3 + 2 * j], (1, HIDDEN), jnp.float32) * 0.1)

    wc = jax.random.normal(keys[-2], (4 * HIDDEN, CLASS_NUM), jnp.float32) * 0.1
    bc = jax.random.normal(keys[-1], (1, CLASS_NUM), jnp.float32) * 0.1

    # all static parameter packing happens ONCE, outside the per-call path
    params = jax.block_until_ready(pack_params(emb_matrix, conv_ws, conv_bs, wc, bc))

    out = textcnn_forward(batch_idx, params)
    out = jax.block_until_ready(out)

    ref = reference_forward(batch_idx, emb_matrix, conv_ws, conv_bs, wc, bc)
    assert out.shape == (B, CLASS_NUM)
    assert jnp.allclose(out, ref, atol=1e-3, rtol=1e-3), "mismatch vs reference"

    print("KERNEL_OK")
</pallas_src>

<mosaic_0001>
module attributes {stable_mosaic.version = 11 : i64} {
  func.func @textcnn_kernel(%arg0: memref<32x5xi32, #tpu.memory_space<vmem>>, %arg1: memref<792x128xf32, #tpu.memory_space<vmem>>, %arg2: memref<2x128xf32, #tpu.memory_space<vmem>>) attributes {dimension_semantics = [], scalar_prefetch = 0 : i64, scratch_operands = 0 : i64, tpu.core_type = #tpu.core_type<tc>} {
    %c0 = arith.constant 0 : index
    %c0_0 = arith.constant 0 : index
    %0 = vector.load %arg0[%c0, %c0_0] : memref<32x5xi32, #tpu.memory_space<vmem>>, vector<32x5xi32>
    %1 = tpu.iota {dimensions = array<i32: 1>} : vector<32x640xi32>
    %2 = vector.extract_strided_slice %0 {offsets = [0, 0], sizes = [32, 1], strides = [1, 1]} : vector<32x5xi32> to vector<32x1xi32>
    %3 = vector.broadcast %2 : vector<32x1xi32> to vector<32x640xi32>
    %4 = arith.cmpi eq, %3, %1 : vector<32x640xi32>
    %5 = vector.extract_strided_slice %0 {offsets = [0, 1], sizes = [32, 1], strides = [1, 1]} : vector<32x5xi32> to vector<32x1xi32>
    %6 = vector.broadcast %5 : vector<32x1xi32> to vector<32x640xi32>
    %7 = arith.cmpi eq, %6, %1 : vector<32x640xi32>
    %8 = arith.ori %4, %7 : vector<32x640xi1>
    %9 = vector.extract_strided_slice %0 {offsets = [0, 2], sizes = [32, 1], strides = [1, 1]} : vector<32x5xi32> to vector<32x1xi32>
    %10 = vector.broadcast %9 : vector<32x1xi32> to vector<32x640xi32>
    %11 = arith.cmpi eq, %10, %1 : vector<32x640xi32>
    %12 = arith.ori %8, %11 : vector<32x640xi1>
    %13 = vector.extract_strided_slice %0 {offsets = [0, 3], sizes = [32, 1], strides = [1, 1]} : vector<32x5xi32> to vector<32x1xi32>
    %14 = vector.broadcast %13 : vector<32x1xi32> to vector<32x640xi32>
    %15 = arith.cmpi eq, %14, %1 : vector<32x640xi32>
    %16 = arith.ori %12, %15 : vector<32x640xi1>
    %17 = vector.extract_strided_slice %0 {offsets = [0, 4], sizes = [32, 1], strides = [1, 1]} : vector<32x5xi32> to vector<32x1xi32>
    %18 = vector.broadcast %17 : vector<32x1xi32> to vector<32x640xi32>
    %19 = arith.cmpi eq, %18, %1 : vector<32x640xi32>
    %20 = arith.ori %16, %19 : vector<32x640xi1>
    %21 = arith.extui %20 : vector<32x640xi1> to vector<32x640xi32>
    %22 = arith.sitofp %21 : vector<32x640xi32> to vector<32x640xf32>
    %c0_1 = arith.constant 0 : index
    %c0_2 = arith.constant 0 : index
    %23 = vector.load %arg1[%c0_1, %c0_2] : memref<792x128xf32, #tpu.memory_space<vmem>>, vector<640x128xf32>
    %cst = arith.constant dense<0.000000e+00> : vector<32x128xf32>
    %24 = tpu.matmul %22, %23, %cst {dimension_numbers = #tpu.dot_dimension_numbers<[1], [0], [0], [1], [0, 0, 1, 1], [], []>} : vector<32x640xf32>, vector<640x128xf32>, vector<32x128xf32> -> vector<32x128xf32>
    %c768 = arith.constant 768 : index
    %c0_3 = arith.constant 0 : index
    %25 = vector.load %arg1[%c768, %c0_3] : memref<792x128xf32, #tpu.memory_space<vmem>>, vector<8x128xf32>
    %26 = vector.extract_strided_slice %25 {offsets = [0, 0], sizes = [1, 128], strides = [1, 1]} : vector<8x128xf32> to vector<1x128xf32>
    %27 = vector.broadcast %26 : vector<1x128xf32> to vector<32x128xf32>
    %28 = arith.addf %24, %27 : vector<32x128xf32>
    %cst_4 = arith.constant 0.000000e+00 : f32
    %29 = vector.broadcast %cst_4 : f32 to vector<32x128xf32>
    %30 = arith.maximumf %28, %29 : vector<32x128xf32>
    %31 = vector.shape_cast %30 : vector<32x128xf32> to vector<2x16x128xf32>
    %c776 = arith.constant 776 : index
    %c0_5 = arith.constant 0 : index
    %32 = vector.load %arg1[%c776, %c0_5] : memref<792x128xf32, #tpu.memory_space<vmem>>, vector<16x128xf32>
    %33 = vector.shape_cast %32 : vector<16x128xf32> to vector<1x16x128xf32>
    %34 = vector.broadcast %33 : vector<1x16x128xf32> to vector<2x16x128xf32>
    %35 = arith.mulf %31, %34 : vector<2x16x128xf32>
    %cst_6 = arith.constant dense<0xFF800000> : vector<2x128xf32>
    %36 = vector.multi_reduction <maximumf>, %35, %cst_6 [1] : vector<2x16x128xf32> to vector<2x128xf32>
    %c640 = arith.constant 640 : index
    %c0_7 = arith.constant 0 : index
    %37 = vector.load %arg1[%c640, %c0_7] : memref<792x128xf32, #tpu.memory_space<vmem>>, vector<128x128xf32>
    %cst_8 = arith.constant dense<0.000000e+00> : vector<2x128xf32>
    %38 = tpu.matmul %36, %37, %cst_8 {dimension_numbers = #tpu.dot_dimension_numbers<[1], [0], [0], [1], [0, 0, 1, 1], [], []>} : vector<2x128xf32>, vector<128x128xf32>, vector<2x128xf32> -> vector<2x128xf32>
    %39 = vector.extract_strided_slice %25 {offsets = [1, 0], sizes = [1, 128], strides = [1, 1]} : vector<8x128xf32> to vector<1x128xf32>
    %40 = vector.broadcast %39 : vector<1x128xf32> to vector<2x128xf32>
    %41 = arith.addf %38, %40 : vector<2x128xf32>
    %c0_9 = arith.constant 0 : index
    %c0_10 = arith.constant 0 : index
    %42 = vector.load %arg2[%c0_9, %c0_10] : memref<2x128xf32, #tpu.memory_space<vmem>>, vector<2x128xf32>
    tpu.vector_store %arg2[%c0_9, %c0_10], %41 {strides = array<i32>} : memref<2x128xf32, #tpu.memory_space<vmem>>, vector<2x128xf32>,
    return
  }
}

</mosaic_0001>

<llo_original>
// kernel: textcnn_forward.1
$region0: #{textcnn_forward.1}
  #allocation0 [shape = 'u32[]', space=smem, size = 0x4, offset = 0x4, fixed_abs, tag = 'smem constant byte address 0x4 - core index']
  #allocation1 [shape = 'u32[144,128]{1,0:T(1,128)}', space=vmem, size = 0x12000, scoped, tag = 'internal scratch']
  %s0 = inlined_call_operand.vmem [shape: s32[32,5], index: 0, kind: input, shape index: {}]
  %s1 = inlined_call_operand.hbm [shape: f32[792,128], index: 1, kind: input, shape index: {}]
  %s2 = inlined_call_operand.hbm [shape: f32[2,128], index: 2, kind: output, shape index: {}]
  %s3 = sld [smem:[#allocation0]]
  $region22: #{textcnn_forward.1} parent=0
    _
  %s5 = ssub.s32 1, %s3
  %s6 = scalar_select 0, %s5, %s3
  $region1: #{textcnn_forward.1} parent=0
    #allocation2 [shape = 'u8[405504]{0}', space=vmem, size = 0x63000, scoped, tag = 'input window, operand 1, single buffered']
    #allocation3 [shape = 's32[1]{0}', space=sflag, size = 0x4, scoped, tag = 'scoped memory for textcnn_forward.1']
    #allocation4 [shape = 's32[1]{0}', space=sflag, size = 0x4, scoped, tag = 'scoped memory for textcnn_forward.1']
    #allocation5 [shape = 'u8[1024]{0}', space=vmem, size = 0x400, scoped, tag = 'output window, operand 0, single buffered']
    %7 = vsyncpa [#allocation3], 0
    %8 = vsyncpa [#allocation4], 0
    // Predicated region
    $region2: #{textcnn_forward.1} parent=1 // pred_check
      _
    $region3: #{textcnn_forward.1} parent=1 // pred_check_branch
      %10 = sbr.rel (0) target = $region5
    $region4: #{textcnn_forward.1} parent=1 // pred_region
      _
    $region5: #{textcnn_forward.1} parent=1 // pred_fallthru
      _
    // Predicated region
    $region6: #{textcnn_forward.1} parent=1 // pred_check
      _
    $region7: #{textcnn_forward.1} parent=1 // pred_check_branch
      %12 = sbr.rel (0) target = $region9
    $region8: #{textcnn_forward.1} parent=1 // pred_region
      %s14 = ssub.s32 12672, 12672
      %15 = vsyncadd [#allocation3], %s14
      %s16 = sshll.u32 [#allocation2], 4
      %s17 = int_to_ptr.vmem [resolvable:$true] %s16
      %22 = dma.hbm_to_vmem [thread:$0]  %s1, 12672, %s17, [#allocation3], 128, 128, 8
    $region9: #{textcnn_forward.1} parent=1 // pred_fallthru
      _
    // Predicated region
    $region10: #{textcnn_forward.1} parent=1 // pred_check
      _
    $region11: #{textcnn_forward.1} parent=1 // pred_check_branch
      %24 = sbr.rel (0) target = $region13
    $region12: #{textcnn_forward.1} parent=1 // pred_region
      %25 = dma.done [#allocation3], 12672
    $region13: #{textcnn_forward.1} parent=1 // pred_fallthru
      _
    %v26 = vld [vmem:[%s0] sm:$0xff]
    %v27 = vld [vmem:[%s0 + $0x8] sm:$0xff]
    %v28 = vld [vmem:[%s0 + $0x10] sm:$0xff]
    %v29 = vld [vmem:[%s0 + $0x18] sm:$0xff]
    %v30 = vlaneseq
    %v31 = vand.u32 %v30, 127
    %v32 = vadd.s32 %v31, 128
    %v33 = vadd.s32 %v31, 256
    %v34 = vadd.s32 %v31, 384
    %v35 = vadd.s32 %v31, 512
    %36 = vset.pattern.permute.xlu0 0
    %37 = vperm.xlu0 %36, %v26
    %v38 = vpop.permute.xlu0 %37
    %39 = vset.pattern.permute.xlu0 0
    %40 = vperm.xlu0 %39, %v27
    %v41 = vpop.permute.xlu0 %40
    %42 = vset.pattern.permute.xlu0 0
    %43 = vperm.xlu0 %42, %v28
    %v44 = vpop.permute.xlu0 %43
    %45 = vset.pattern.permute.xlu0 0
    %46 = vperm.xlu0 %45, %v29
    %v47 = vpop.permute.xlu0 %46
    %vm48 = vcmp.eq.s32.totalorder %v38, %v31
    %vm49 = vcmp.eq.s32.totalorder %v38, %v32
    %vm50 = vcmp.eq.s32.totalorder %v38, %v33
    %vm51 = vcmp.eq.s32.totalorder %v38, %v34
    %vm52 = vcmp.eq.s32.totalorder %v38, %v35
    %vm53 = vcmp.eq.s32.totalorder %v41, %v31
    %vm54 = vcmp.eq.s32.totalorder %v41, %v32
    %vm55 = vcmp.eq.s32.totalorder %v41, %v33
    %vm56 = vcmp.eq.s32.totalorder %v41, %v34
    %vm57 = vcmp.eq.s32.totalorder %v41, %v35
    %vm58 = vcmp.eq.s32.totalorder %v44, %v31
    %vm59 = vcmp.eq.s32.totalorder %v44, %v32
    %vm60 = vcmp.eq.s32.totalorder %v44, %v33
    %vm61 = vcmp.eq.s32.totalorder %v44, %v34
    %vm62 = vcmp.eq.s32.totalorder %v44, %v35
    %vm63 = vcmp.eq.s32.totalorder %v47, %v31
    %vm64 = vcmp.eq.s32.totalorder %v47, %v32
    %vm65 = vcmp.eq.s32.totalorder %v47, %v33
    %vm66 = vcmp.eq.s32.totalorder %v47, %v34
    %vm67 = vcmp.eq.s32.totalorder %v47, %v35
    %68 = vset.pattern.permute.xlu0 1
    %69 = vperm.xlu0 %68, %v26
    %v70 = vpop.permute.xlu0 %69
    %71 = vset.pattern.permute.xlu0 1
    %72 = vperm.xlu0 %71, %v27
    %v73 = vpop.permute.xlu0 %72
    %74 = vset.pattern.permute.xlu0 1
    %75 = vperm.xlu0 %74, %v28
    %v76 = vpop.permute.xlu0 %75
    %77 = vset.pattern.permute.xlu0 1
    %78 = vperm.xlu0 %77, %v29
    %v79 = vpop.permute.xlu0 %78
    %vm80 = vcmp.eq.s32.totalorder %v70, %v31
    %vm81 = vcmp.eq.s32.totalorder %v70, %v32
    %vm82 = vcmp.eq.s32.totalorder %v70, %v33
    %vm83 = vcmp.eq.s32.totalorder %v70, %v34
    %vm84 = vcmp.eq.s32.totalorder %v70, %v35
    %vm85 = vcmp.eq.s32.totalorder %v73, %v31
    %vm86 = vcmp.eq.s32.totalorder %v73, %v32
    %vm87 = vcmp.eq.s32.totalorder %v73, %v33
    %vm88 = vcmp.eq.s32.totalorder %v73, %v34
    %vm89 = vcmp.eq.s32.totalorder %v73, %v35
    %vm90 = vcmp.eq.s32.totalorder %v76, %v31
    %vm91 = vcmp.eq.s32.totalorder %v76, %v32
    %vm92 = vcmp.eq.s32.totalorder %v76, %v33
    %vm93 = vcmp.eq.s32.totalorder %v76, %v34
    %vm94 = vcmp.eq.s32.totalorder %v76, %v35
    %vm95 = vcmp.eq.s32.totalorder %v79, %v31
    %vm96 = vcmp.eq.s32.totalorder %v79, %v32
    %vm97 = vcmp.eq.s32.totalorder %v79, %v33
    %vm98 = vcmp.eq.s32.totalorder %v79, %v34
    %vm99 = vcmp.eq.s32.totalorder %v79, %v35
    %vm100 = vmor %vm48, %vm80
    %vm101 = vmor %vm49, %vm81
    %vm102 = vmor %vm50, %vm82
    %vm103 = vmor %vm51, %vm83
    %vm104 = vmor %vm52, %vm84
    %vm105 = vmor %vm53, %vm85
    %vm106 = vmor %vm54, %vm86
    %vm107 = vmor %vm55, %vm87
    %vm108 = vmor %vm56, %vm88
    %vm109 = vmor %vm57, %vm89
    %vm110 = vmor %vm58, %vm90
    %vm111 = vmor %vm59, %vm91
    %vm112 = vmor %vm60, %vm92
    %vm113 = vmor %vm61, %vm93
    %vm114 = vmor %vm62, %vm94
    %vm115 = vmor %vm63, %vm95
    %vm116 = vmor %vm64, %vm96
    %vm117 = vmor %vm65, %vm97
    %vm118 = vmor %vm66, %vm98
    %vm119 = vmor %vm67, %vm99
    %120 = vset.pattern.permute.xlu0 2
    %121 = vperm.xlu0 %120, %v26
    %v122 = vpop.permute.xlu0 %121
    %123 = vset.pattern.permute.xlu0 2
    %124 = vperm.xlu0 %123, %v27
    %v125 = vpop.permute.xlu0 %124
    %126 = vset.pattern.permute.xlu0 2
    %127 = vperm.xlu0 %126, %v28
    %v128 = vpop.permute.xlu0 %127
    %129 = vset.pattern.permute.xlu0 2
    %130 = vperm.xlu0 %129, %v29
    %v131 = vpop.permute.xlu0 %130
    %vm132 = vcmp.eq.s32.totalorder %v122, %v31
    %vm133 = vcmp.eq.s32.totalorder %v122, %v32
    %vm134 = vcmp.eq.s32.totalorder %v122, %v33
    %vm135 = vcmp.eq.s32.totalorder %v122, %v34
    %vm136 = vcmp.eq.s32.totalorder %v122, %v35
    %vm137 = vcmp.eq.s32.totalorder %v125, %v31
    %vm138 = vcmp.eq.s32.totalorder %v125, %v32
    %vm139 = vcmp.eq.s32.totalorder %v125, %v33
    %vm140 = vcmp.eq.s32.totalorder %v125, %v34
    %vm141 = vcmp.eq.s32.totalorder %v125, %v35
    %vm142 = vcmp.eq.s32.totalorder %v128, %v31
    %vm143 = vcmp.eq.s32.totalorder %v128, %v32
    %vm144 = vcmp.eq.s32.totalorder %v128, %v33
    %vm145 = vcmp.eq.s32.totalorder %v128, %v34
    %vm146 = vcmp.eq.s32.totalorder %v128, %v35
    %vm147 = vcmp.eq.s32.totalorder %v131, %v31
    %vm148 = vcmp.eq.s32.totalorder %v131, %v32
    %vm149 = vcmp.eq.s32.totalorder %v131, %v33
    %vm150 = vcmp.eq.s32.totalorder %v131, %v34
    %vm151 = vcmp.eq.s32.totalorder %v131, %v35
    %vm152 = vmor %vm100, %vm132
    %vm153 = vmor %vm101, %vm133
    %vm154 = vmor %vm102, %vm134
    %vm155 = vmor %vm103, %vm135
    %vm156 = vmor %vm104, %vm136
    %vm157 = vmor %vm105, %vm137
    %vm158 = vmor %vm106, %vm138
    %vm159 = vmor %vm107, %vm139
    %vm160 = vmor %vm108, %vm140
    %vm161 = vmor %vm109, %vm141
    %vm162 = vmor %vm110, %vm142
    %vm163 = vmor %vm111, %vm143
    %vm164 = vmor %vm112, %vm144
    %vm165 = vmor %vm113, %vm145
    %vm166 = vmor %vm114, %vm146
    %vm167 = vmor %vm115, %vm147
    %vm168 = vmor %vm116, %vm148
    %vm169 = vmor %vm117, %vm149
    %vm170 = vmor %vm118, %vm150
    %vm171 = vmor %vm119, %vm151
    %172 = vset.pattern.permute.xlu0 3
    %173 = vperm.xlu0 %172, %v26
    %v174 = vpop.permute.xlu0 %173
    %175 = vset.pattern.permute.xlu0 3
    %176 = vperm.xlu0 %175, %v27
    %v177 = vpop.permute.xlu0 %176
    %178 = vset.pattern.permute.xlu0 3
    %179 = vperm.xlu0 %178, %v28
    %v180 = vpop.permute.xlu0 %179
    %181 = vset.pattern.permute.xlu0 3
    %182 = vperm.xlu0 %181, %v29
    %v183 = vpop.permute.xlu0 %182
    %vm184 = vcmp.eq.s32.totalorder %v174, %v31
    %vm185 = vcmp.eq.s32.totalorder %v174, %v32
    %vm186 = vcmp.eq.s32.totalorder %v174, %v33
    %vm187 = vcmp.eq.s32.totalorder %v174, %v34
    %vm188 = vcmp.eq.s32.totalorder %v174, %v35
    %vm189 = vcmp.eq.s32.totalorder %v177, %v31
    %vm190 = vcmp.eq.s32.totalorder %v177, %v32
    %vm191 = vcmp.eq.s32.totalorder %v177, %v33
    %vm192 = vcmp.eq.s32.totalorder %v177, %v34
    %vm193 = vcmp.eq.s32.totalorder %v177, %v35
    %vm194 = vcmp.eq.s32.totalorder %v180, %v31
    %vm195 = vcmp.eq.s32.totalorder %v180, %v32
    %vm196 = vcmp.eq.s32.totalorder %v180, %v33
    %vm197 = vcmp.eq.s32.totalorder %v180, %v34
    %vm198 = vcmp.eq.s32.totalorder %v180, %v35
    %vm199 = vcmp.eq.s32.totalorder %v183, %v31
    %vm200 = vcmp.eq.s32.totalorder %v183, %v32
    %vm201 = vcmp.eq.s32.totalorder %v183, %v33
    %vm202 = vcmp.eq.s32.totalorder %v183, %v34
    %vm203 = vcmp.eq.s32.totalorder %v183, %v35
    %vm204 = vmor %vm152, %vm184
    %vm205 = vmor %vm153, %vm185
    %vm206 = vmor %vm154, %vm186
    %vm207 = vmor %vm155, %vm187
    %vm208 = vmor %vm156, %vm188
    %vm209 = vmor %vm157, %vm189
    %vm210 = vmor %vm158, %vm190
    %vm211 = vmor %vm159, %vm191
    %vm212 = vmor %vm160, %vm192
    %vm213 = vmor %vm161, %vm193
    %vm214 = vmor %vm162, %vm194
    %vm215 = vmor %vm163, %vm195
    %vm216 = vmor %vm164, %vm196
    %vm217 = vmor %vm165, %vm197
    %vm218 = vmor %vm166, %vm198
    %vm219 = vmor %vm167, %vm199
    %vm220 = vmor %vm168, %vm200
    %vm221 = vmor %vm169, %vm201
    %vm222 = vmor %vm170, %vm202
    %vm223 = vmor %vm171, %vm203
    %224 = vset.pattern.permute.xlu0 4
    %225 = vperm.xlu0 %224, %v26
    %v226 = vpop.permute.xlu0 %225
    %227 = vset.pattern.permute.xlu0 4
    %228 = vperm.xlu0 %227, %v27
    %v229 = vpop.permute.xlu0 %228
    %230 = vset.pattern.permute.xlu0 4
    %231 = vperm.xlu0 %230, %v28
    %v232 = vpop.permute.xlu0 %231
    %233 = vset.pattern.permute.xlu0 4
    %234 = vperm.xlu0 %233, %v29
    %v235 = vpop.permute.xlu0 %234
    %vm236 = vcmp.eq.s32.totalorder %v226, %v31
    %vm237 = vcmp.eq.s32.totalorder %v226, %v32
    %vm238 = vcmp.eq.s32.totalorder %v226, %v33
    %vm239 = vcmp.eq.s32.totalorder %v226, %v34
    %vm240 = vcmp.eq.s32.totalorder %v226, %v35
    %vm241 = vcmp.eq.s32.totalorder %v229, %v31
    %vm242 = vcmp.eq.s32.totalorder %v229, %v32
    %vm243 = vcmp.eq.s32.totalorder %v229, %v33
    %vm244 = vcmp.eq.s32.totalorder %v229, %v34
    %vm245 = vcmp.eq.s32.totalorder %v229, %v35
    %vm246 = vcmp.eq.s32.totalorder %v232, %v31
    %vm247 = vcmp.eq.s32.totalorder %v232, %v32
    %vm248 = vcmp.eq.s32.totalorder %v232, %v33
    %vm249 = vcmp.eq.s32.totalorder %v232, %v34
    %vm250 = vcmp.eq.s32.totalorder %v232, %v35
    %vm251 = vcmp.eq.s32.totalorder %v235, %v31
    %vm252 = vcmp.eq.s32.totalorder %v235, %v32
    %vm253 = vcmp.eq.s32.totalorder %v235, %v33
    %vm254 = vcmp.eq.s32.totalorder %v235, %v34
    %vm255 = vcmp.eq.s32.totalorder %v235, %v35
    %vm256 = vmor %vm204, %vm236
    %vm257 = vmor %vm205, %vm237
    %vm258 = vmor %vm206, %vm238
    %vm259 = vmor %vm207, %vm239
    %vm260 = vmor %vm208, %vm240
    %vm261 = vmor %vm209, %vm241
    %vm262 = vmor %vm210, %vm242
    %vm263 = vmor %vm211, %vm243
    %vm264 = vmor %vm212, %vm244
    %vm265 = vmor %vm213, %vm245
    %vm266 = vmor %vm214, %vm246
    %vm267 = vmor %vm215, %vm247
    %vm268 = vmor %vm216, %vm248
    %vm269 = vmor %vm217, %vm249
    %vm270 = vmor %vm218, %vm250
    %vm271 = vmor %vm219, %vm251
    %vm272 = vmor %vm220, %vm252
    %vm273 = vmor %vm221, %vm253
    %vm274 = vmor %vm222, %vm254
    %vm275 = vmor %vm223, %vm255
    %v276 = vsel %vm256, 1, 0
    %v277 = vsel %vm257, 1, 0
    %v278 = vsel %vm258, 1, 0
    %v279 = vsel %vm259, 1, 0
    %v280 = vsel %vm260, 1, 0
    %v281 = vsel %vm261, 1, 0
    %v282 = vsel %vm262, 1, 0
    %v283 = vsel %vm263, 1, 0
    %v284 = vsel %vm264, 1, 0
    %v285 = vsel %vm265, 1, 0
    %v286 = vsel %vm266, 1, 0
    %v287 = vsel %vm267, 1, 0
    %v288 = vsel %vm268, 1, 0
    %v289 = vsel %vm269, 1, 0
    %v290 = vsel %vm270, 1, 0
    %v291 = vsel %vm271, 1, 0
    %v292 = vsel %vm272, 1, 0
    %v293 = vsel %vm273, 1, 0
    %v294 = vsel %vm274, 1, 0
    %v295 = vsel %vm275, 1, 0
    %v296 = vcvt.s32.f32 %v276
    %v297 = vcvt.s32.f32 %v277
    %v298 = vcvt.s32.f32 %v278
    %v299 = vcvt.s32.f32 %v279
    %v300 = vcvt.s32.f32 %v280
    %v301 = vcvt.s32.f32 %v281
    %v302 = vcvt.s32.f32 %v282
    %v303 = vcvt.s32.f32 %v283
    %v304 = vcvt.s32.f32 %v284
    %v305 = vcvt.s32.f32 %v285
    %v306 = vcvt.s32.f32 %v286
    %v307 = vcvt.s32.f32 %v287
    %v308 = vcvt.s32.f32 %v288
    %v309 = vcvt.s32.f32 %v289
    %v310 = vcvt.s32.f32 %v290
    %v311 = vcvt.s32.f32 %v291
    %v312 = vcvt.s32.f32 %v292
    %v313 = vcvt.s32.f32 %v293
    %v314 = vcvt.s32.f32 %v294
    %v315 = vcvt.s32.f32 %v295
    %v316 = vld [vmem:[#allocation2] sm:$0xff]
    %v317 = vld [vmem:[#allocation2 + $0x8] sm:$0xff]
    %v318 = vld [vmem:[#allocation2 + $0x10] sm:$0xff]
    %v319 = vld [vmem:[#allocation2 + $0x18] sm:$0xff]
    %v320 = vld [vmem:[#allocation2 + $0x20] sm:$0xff]
    %v321 = vld [vmem:[#allocation2 + $0x28] sm:$0xff]
    %v322 = vld [vmem:[#allocation2 + $0x30] sm:$0xff]
    %v323 = vld [vmem:[#allocation2 + $0x38] sm:$0xff]
    %v324 = vld [vmem:[#allocation2 + $0x40] sm:$0xff]
    %v325 = vld [vmem:[#allocation2 + $0x48] sm:$0xff]
    %v326 = vld [vmem:[#allocation2 + $0x50] sm:$0xff]
    %v327 = vld [vmem:[#allocation2 + $0x58] sm:$0xff]
    %v328 = vld [vmem:[#allocation2 + $0x60] sm:$0xff]
    %v329 = vld [vmem:[#allocation2 + $0x68] sm:$0xff]
    %v330 = vld [vmem:[#allocation2 + $0x70] sm:$0xff]
    %v331 = vld [vmem:[#allocation2 + $0x78] sm:$0xff]
    %v332 = vld [vmem:[#allocation2 + $0x80] sm:$0xff]
    %v333 = vld [vmem:[#allocation2 + $0x88] sm:$0xff]
    %v334 = vld [vmem:[#allocation2 + $0x90] sm:$0xff]
    %v335 = vld [vmem:[#allocation2 + $0x98] sm:$0xff]
    %v336 = vld [vmem:[#allocation2 + $0xa0] sm:$0xff]
    %v337 = vld [vmem:[#allocation2 + $0xa8] sm:$0xff]
    %v338 = vld [vmem:[#allocation2 + $0xb0] sm:$0xff]
    %v339 = vld [vmem:[#allocation2 + $0xb8] sm:$0xff]
    %v340 = vld [vmem:[#allocation2 + $0xc0] sm:$0xff]
    %v341 = vld [vmem:[#allocation2 + $0xc8] sm:$0xff]
    %v342 = vld [vmem:[#allocation2 + $0xd0] sm:$0xff]
    %v343 = vld [vmem:[#allocation2 + $0xd8] sm:$0xff]
    %v344 = vld [vmem:[#allocation2 + $0xe0] sm:$0xff]
    %v345 = vld [vmem:[#allocation2 + $0xe8] sm:$0xff]
    %v346 = vld [vmem:[#allocation2 + $0xf0] sm:$0xff]
    %v347 = vld [vmem:[#allocation2 + $0xf8] sm:$0xff]
    %v348 = vld [vmem:[#allocation2 + $0x100] sm:$0xff]
    %v349 = vld [vmem:[#allocation2 + $0x108] sm:$0xff]
    %v350 = vld [vmem:[#allocation2 + $0x110] sm:$0xff]
    %v351 = vld [vmem:[#allocation2 + $0x118] sm:$0xff]
    %v352 = vld [vmem:[#allocation2 + $0x120] sm:$0xff]
    %v353 = vld [vmem:[#allocation2 + $0x128] sm:$0xff]
    %v354 = vld [vmem:[#allocation2 + $0x130] sm:$0xff]
    %v355 = vld [vmem:[#allocation2 + $0x138] sm:$0xff]
    %v356 = vld [vmem:[#allocation2 + $0x140] sm:$0xff]
    %v357 = vld [vmem:[#allocation2 + $0x148] sm:$0xff]
    %v358 = vld [vmem:[#allocation2 + $0x150] sm:$0xff]
    %v359 = vld [vmem:[#allocation2 + $0x158] sm:$0xff]
    %v360 = vld [vmem:[#allocation2 + $0x160] sm:$0xff]
    %v361 = vld [vmem:[#allocation2 + $0x168] sm:$0xff]
    %v362 = vld [vmem:[#allocation2 + $0x170] sm:$0xff]
    %v363 = vld [vmem:[#allocation2 + $0x178] sm:$0xff]
    %v364 = vld [vmem:[#allocation2 + $0x180] sm:$0xff]
    %v365 = vld [vmem:[#allocation2 + $0x188] sm:$0xff]
    %v366 = vld [vmem:[#allocation2 + $0x190] sm:$0xff]
    %v367 = vld [vmem:[#allocation2 + $0x198] sm:$0xff]
    %v368 = vld [vmem:[#allocation2 + $0x1a0] sm:$0xff]
    %v369 = vld [vmem:[#allocation2 + $0x1a8] sm:$0xff]
    %v370 = vld [vmem:[#allocation2 + $0x1b0] sm:$0xff]
    %v371 = vld [vmem:[#allocation2 + $0x1b8] sm:$0xff]
    %v372 = vld [vmem:[#allocation2 + $0x1c0] sm:$0xff]
    %v373 = vld [vmem:[#allocation2 + $0x1c8] sm:$0xff]
    %v374 = vld [vmem:[#allocation2 + $0x1d0] sm:$0xff]
    %v375 = vld [vmem:[#allocation2 + $0x1d8] sm:$0xff]
    %v376 = vld [vmem:[#allocation2 + $0x1e0] sm:$0xff]
    %v377 = vld [vmem:[#allocation2 + $0x1e8] sm:$0xff]
    %v378 = vld [vmem:[#allocation2 + $0x1f0] sm:$0xff]
    %v379 = vld [vmem:[#allocation2 + $0x1f8] sm:$0xff]
    %v380 = vld [vmem:[#allocation2 + $0x200] sm:$0xff]
    %v381 = vld [vmem:[#allocation2 + $0x208] sm:$0xff]
    %v382 = vld [vmem:[#allocation2 + $0x210] sm:$0xff]
    %v383 = vld [vmem:[#allocation2 + $0x218] sm:$0xff]
    %v384 = vld [vmem:[#allocation2 + $0x220] sm:$0xff]
    %v385 = vld [vmem:[#allocation2 + $0x228] sm:$0xff]
    %v386 = vld [vmem:[#allocation2 + $0x230] sm:$0xff]
    %v387 = vld [vmem:[#allocation2 + $0x238] sm:$0xff]
    %v388 = vld [vmem:[#allocation2 + $0x240] sm:$0xff]
    %v389 = vld [vmem:[#allocation2 + $0x248] sm:$0xff]
    %v390 = vld [vmem:[#allocation2 + $0x250] sm:$0xff]
    %v391 = vld [vmem:[#allocation2 + $0x258] sm:$0xff]
    %v392 = vld [vmem:[#allocation2 + $0x260] sm:$0xff]
    %v393 = vld [vmem:[#allocation2 + $0x268] sm:$0xff]
    %v394 = vld [vmem:[#allocation2 + $0x270] sm:$0xff]
    %v395 = vld [vmem:[#allocation2 + $0x278] sm:$0xff]
    %v396 = vld [vmem:[#allocation2 + $0x300] sm:$0xff]
    %v397 = vlaneseq
    %v398 = vshrl.u32 %v397, 7
    %v399 = vsub.s32 0, %v398
    %v400 = vrot.slane %v396, %v399
    %401 = vmatprep.subr.mxu0 0.0
    %402 = vmatpush1.msra.mxu0 %v316
    %403 = vmatprep.subr.mxu0 0.0
    %404 = vmatpush1.msra.mxu0 %v317
    %405 = vmatprep.subr.mxu0 0.0
    %406 = vmatpush1.msra.mxu0 %v318
    %407 = vmatprep.subr.mxu0 0.0
    %408 = vmatpush1.msra.mxu0 %v319
    %409 = vmatprep.subr.mxu0 0.0
    %410 = vmatpush1.msra.mxu0 %v320
    %411 = vmatprep.subr.mxu0 0.0
    %412 = vmatpush1.msra.mxu0 %v321
    %413 = vmatprep.subr.mxu0 0.0
    %414 = vmatpush1.msra.mxu0 %v322
    %415 = vmatprep.subr.mxu0 0.0
    %416 = vmatpush1.msra.mxu0 %v323
    %417 = vmatprep.subr.mxu0 0.0
    %418 = vmatpush1.msra.mxu0 %v324
    %419 = vmatprep.subr.mxu0 0.0
    %420 = vmatpush1.msra.mxu0 %v325
    %421 = vmatprep.subr.mxu0 0.0
    %422 = vmatpush1.msra.mxu0 %v326
    %423 = vmatprep.subr.mxu0 0.0
    %424 = vmatpush1.msra.mxu0 %v327
    %425 = vmatprep.subr.mxu0 0.0
    %426 = vmatpush1.msra.mxu0 %v328
    %427 = vmatprep.subr.mxu0 0.0
    %428 = vmatpush1.msra.mxu0 %v329
    %429 = vmatprep.subr.mxu0 0.0
    %430 = vmatpush1.msra.mxu0 %v330
    %431 = vmatprep.subr.mxu0 0.0
    %432 = vmatpush1.msra.mxu0 %v331
    %433 = vmatprep.subr.mxu0 0.0
    %434 = vmatpush1.msra.mxu0 %v332
    %435 = vmatprep.subr.mxu0 0.0
    %436 = vmatpush1.msra.mxu0 %v333
    %437 = vmatprep.subr.mxu0 0.0
    %438 = vmatpush1.msra.mxu0 %v334
    %439 = vmatprep.subr.mxu0 0.0
    %440 = vmatpush1.msra.mxu0 %v335
    %441 = vmatprep.subr.mxu0 0.0
    %442 = vmatpush1.msra.mxu0 %v336
    %443 = vmatprep.subr.mxu0 0.0
    %444 = vmatpush1.msra.mxu0 %v337
    %445 = vmatprep.subr.mxu0 0.0
    %446 = vmatpush1.msra.mxu0 %v338
    %447 = vmatprep.subr.mxu0 0.0
    %448 = vmatpush1.msra.mxu0 %v339
    %449 = vmatprep.subr.mxu0 0.0
    %450 = vmatpush1.msra.mxu0 %v340
    %451 = vmatprep.subr.mxu0 0.0
    %452 = vmatpush1.msra.mxu0 %v341
    %453 = vmatprep.subr.mxu0 0.0
    %454 = vmatpush1.msra.mxu0 %v342
    %455 = vmatprep.subr.mxu0 0.0
    %456 = vmatpush1.msra.mxu0 %v343
    %457 = vmatprep.subr.mxu0 0.0
    %458 = vmatpush1.msra.mxu0 %v344
    %459 = vmatprep.subr.mxu0 0.0
    %460 = vmatpush1.msra.mxu0 %v345
    %461 = vmatprep.subr.mxu0 0.0
    %462 = vmatpush1.msra.mxu0 %v346
    %463 = vmatprep.subr.mxu0 0.0
    %464 = vmatpush1.msra.mxu0 %v347
    %465 = vmatprep.mubr.f32.mxu0 %v297
    %466 = vmatmul.mubr.f32.gmra.mrb[0].mxu0 %v296
    %v467 = vpop.f32.mrb[0].mxu0
    %v468 = vadd.f32 %v400, %v467
    %v469 = vpop.f32.mrb[0].mxu0
    %470 = vmatprep.mubr.f32.mxu0 %v302
    %471 = vmatmul.mubr.f32.gmra.mrb[0].mxu0 %v301
    %v472 = vpop.f32.mrb[0].mxu0
    %v473 = vadd.f32 %v400, %v472
    %v474 = vpop.f32.mrb[0].mxu0
    %475 = vmatprep.mubr.f32.mxu0 %v307
    %476 = vmatmul.mubr.f32.gmra.mrb[0].mxu0 %v306
    %v477 = vpop.f32.mrb[0].mxu0
    %v478 = vadd.f32 %v400, %v477
    %v479 = vpop.f32.mrb[0].mxu0
    %480 = vmatprep.mubr.f32.mxu0 %v312
    %481 = vmatmul.mubr.f32.gmra.mrb[0].mxu0 %v311
    %v482 = vpop.f32.mrb[0].mxu0
    %v483 = vadd.f32 %v400, %v482
    %v484 = vpop.f32.mrb[0].mxu0
    %485 = vdwg.mxu0
    %486 = vmatprep.subr.mxu0 0.0
    %487 = vmatpush1.msra.mxu0 %v348
    %488 = vmatprep.subr.mxu0 0.0
    %489 = vmatpush1.msra.mxu0 %v349
    %490 = vmatprep.subr.mxu0 0.0
    %491 = vmatpush1.msra.mxu0 %v350
    %492 = vmatprep.subr.mxu0 0.0
    %493 = vmatpush1.msra.mxu0 %v351
    %494 = vmatprep.subr.mxu0 0.0
    %495 = vmatpush1.msra.mxu0 %v352
    %496 = vmatprep.subr.mxu0 0.0
    %497 = vmatpush1.msra.mxu0 %v353
    %498 = vmatprep.subr.mxu0 0.0
    %499 = vmatpush1.msra.mxu0 %v354
    %500 = vmatprep.subr.mxu0 0.0
    %501 = vmatpush1.msra.mxu0 %v355
    %502 = vmatprep.subr.mxu0 0.0
    %503 = vmatpush1.msra.mxu0 %v356
    %504 = vmatprep.subr.mxu0 0.0
    %505 = vmatpush1.msra.mxu0 %v357
    %506 = vmatprep.subr.mxu0 0.0
    %507 = vmatpush1.msra.mxu0 %v358
    %508 = vmatprep.subr.mxu0 0.0
    %509 = vmatpush1.msra.mxu0 %v359
    %510 = vmatprep.subr.mxu0 0.0
    %511 = vmatpush1.msra.mxu0 %v360
    %512 = vmatprep.subr.mxu0 0.0
    %513 = vmatpush1.msra.mxu0 %v361
    %514 = vmatprep.subr.mxu0 0.0
    %515 = vmatpush1.msra.mxu0 %v362
    %516 = vmatprep.subr.mxu0 0.0
    %517 = vmatpush1.msra.mxu0 %v363
    %518 = vmatprep.subr.mxu0 0.0
    %519 = vmatpush1.msra.mxu0 %v364
    %520 = vmatprep.subr.mxu0 0.0
    %521 = vmatpush1.msra.mxu0 %v365
    %522 = vmatprep.subr.mxu0 0.0
    %523 = vmatpush1.msra.mxu0 %v366
    %524 = vmatprep.subr.mxu0 0.0
    %525 = vmatpush1.msra.mxu0 %v367
    %526 = vmatprep.subr.mxu0 0.0
    %527 = vmatpush1.msra.mxu0 %v368
    %528 = vmatprep.subr.mxu0 0.0
    %529 = vmatpush1.msra.mxu0 %v369
    %530 = vmatprep.subr.mxu0 0.0
    %531 = vmatpush1.msra.mxu0 %v370
    %532 = vmatprep.subr.mxu0 0.0
    %533 = vmatpush1.msra.mxu0 %v371
    %534 = vmatprep.subr.mxu0 0.0
    %535 = vmatpush1.msra.mxu0 %v372
    %536 = vmatprep.subr.mxu0 0.0
    %537 = vmatpush1.msra.mxu0 %v373
    %538 = vmatprep.subr.mxu0 0.0
    %539 = vmatpush1.msra.mxu0 %v374
    %540 = vmatprep.subr.mxu0 0.0
    %541 = vmatpush1.msra.mxu0 %v375
    %542 = vmatprep.subr.mxu0 0.0
    %543 = vmatpush1.msra.mxu0 %v376
    %544 = vmatprep.subr.mxu0 0.0
    %545 = vmatpush1.msra.mxu0 %v377
    %546 = vmatprep.subr.mxu0 0.0
    %547 = vmatpush1.msra.mxu0 %v378
    %548 = vmatprep.subr.mxu0 0.0
    %549 = vmatpush1.msra.mxu0 %v379
    %550 = vmatprep.mubr.f32.mxu0 %v299
    %551 = vmatmul.mubr.f32.gmra.mrb[0].mxu0 %v298
    %v552 = vpop.f32.mrb[0].mxu0
    %v553 = vadd.f32 %v468, %v552
    %v554 = vpop.f32.mrb[0].mxu0
    %555 = vmatprep.mubr.f32.mxu0 %v304
    %556 = vmatmul.mubr.f32.gmra.mrb[0].mxu0 %v303
    %v557 = vpop.f32.mrb[0].mxu0
    %v558 = vadd.f32 %v473, %v557
    %v559 = vpop.f32.mrb[0].mxu0
    %560 = vmatprep.mubr.f32.mxu0 %v309
    %561 = vmatmul.mubr.f32.gmra.mrb[0].mxu0 %v308
    %v562 = vpop.f32.mrb[0].mxu0
    %v563 = vadd.f32 %v478, %v562
    %v564 = vpop.f32.mrb[0].mxu0
    %565 = vmatprep.mubr.f32.mxu0 %v314
    %566 = vmatmul.mubr.f32.gmra.mrb[0].mxu0 %v313
    %v567 = vpop.f32.mrb[0].mxu0
    %v568 = vadd.f32 %v483, %v567
    %v569 = vpop.f32.mrb[0].mxu0
    %570 = vdwg.mxu0
    %571 = vmatprep.subr.mxu0 0.0
    %572 = vmatpush1.msra.mxu0 %v380
    %573 = vmatprep.subr.mxu0 0.0
    %574 = vmatpush1.msra.mxu0 %v381
    %575 = vmatprep.subr.mxu0 0.0
    %576 = vmatpush1.msra.mxu0 %v382
    %577 = vmatprep.subr.mxu0 0.0
    %578 = vmatpush1.msra.mxu0 %v383
    %579 = vmatprep.subr.mxu0 0.0
    %580 = vmatpush1.msra.mxu0 %v384
    %581 = vmatprep.subr.mxu0 0.0
    %582 = vmatpush1.msra.mxu0 %v385
    %583 = vmatprep.subr.mxu0 0.0
    %584 = vmatpush1.msra.mxu0 %v386
    %585 = vmatprep.subr.mxu0 0.0
    %586 = vmatpush1.msra.mxu0 %v387
    %587 = vmatprep.subr.mxu0 0.0
    %588 = vmatpush1.msra.mxu0 %v388
    %589 = vmatprep.subr.mxu0 0.0
    %590 = vmatpush1.msra.mxu0 %v389
    %591 = vmatprep.subr.mxu0 0.0
    %592 = vmatpush1.msra.mxu0 %v390
    %593 = vmatprep.subr.mxu0 0.0
    %594 = vmatpush1.msra.mxu0 %v391
    %595 = vmatprep.subr.mxu0 0.0
    %596 = vmatpush1.msra.mxu0 %v392
    %597 = vmatprep.subr.mxu0 0.0
    %598 = vmatpush1.msra.mxu0 %v393
    %599 = vmatprep.subr.mxu0 0.0
    %600 = vmatpush1.msra.mxu0 %v394
    %601 = vmatprep.subr.mxu0 0.0
    %602 = vmatpush1.msra.mxu0 %v395
    %603 = vmatprep.subr.mxu0 0.0
    %604 = vmatpush1.msra.mxu0 0.0
    %605 = vmatprep.subr.mxu0 0.0
    %606 = vmatpush1.msra.mxu0 0.0
    %607 = vmatprep.subr.mxu0 0.0
    %608 = vmatpush1.msra.mxu0 0.0
    %609 = vmatprep.subr.mxu0 0.0
    %610 = vmatpush1.msra.mxu0 0.0
    %611 = vmatprep.subr.mxu0 0.0
    %612 = vmatpush1.msra.mxu0 0.0
    %613 = vmatprep.subr.mxu0 0.0
    %614 = vmatpush1.msra.mxu0 0.0
    %615 = vmatprep.subr.mxu0 0.0
    %616 = vmatpush1.msra.mxu0 0.0
    %617 = vmatprep.subr.mxu0 0.0
    %618 = vmatpush1.msra.mxu0 0.0
    %619 = vmatprep.subr.mxu0 0.0
    %620 = vmatpush1.msra.mxu0 0.0
    %621 = vmatprep.subr.mxu0 0.0
    %622 = vmatpush1.msra.mxu0 0.0
    %623 = vmatprep.subr.mxu0 0.0
    %624 = vmatpush1.msra.mxu0 0.0
    %625 = vmatprep.subr.mxu0 0.0
    %626 = vmatpush1.msra.mxu0 0.0
    %627 = vmatprep.subr.mxu0 0.0
    %628 = vmatpush1.msra.mxu0 0.0
    %629 = vmatprep.subr.mxu0 0.0
    %630 = vmatpush1.msra.mxu0 0.0
    %631 = vmatprep.subr.mxu0 0.0
    %632 = vmatpush1.msra.mxu0 0.0
    %633 = vmatprep.subr.mxu0 0.0
    %634 = vmatpush1.msra.mxu0 0.0
    %635 = vmatprep.mubr.f32.mxu0 0.0
    %636 = vmatmul.mubr.f32.gmra.mrb[0].mxu0 %v300
    %v637 = vpop.f32.mrb[0].mxu0
    %v638 = vadd.f32 %v553, %v637
    %v639 = vpop.f32.mrb[0].mxu0
    %640 = vmatprep.mubr.f32.mxu0 0.0
    %641 = vmatmul.mubr.f32.gmra.mrb[0].mxu0 %v305
    %v642 = vpop.f32.mrb[0].mxu0
    %v643 = vadd.f32 %v558, %v642
    %v644 = vpop.f32.mrb[0].mxu0
    %645 = vmatprep.mubr.f32.mxu0 0.0
    %646 = vmatmul.mubr.f32.gmra.mrb[0].mxu0 %v310
    %v647 = vpop.f32.mrb[0].mxu0
    %v648 = vadd.f32 %v563, %v647
    %v649 = vpop.f32.mrb[0].mxu0
    %650 = vmatprep.mubr.f32.mxu0 0.0
    %651 = vmatmul.mubr.f32.gmra.mrb[0].mxu0 %v315
    %v652 = vpop.f32.mrb[0].mxu0
    %v653 = vadd.f32 %v568, %v652
    %v654 = vpop.f32.mrb[0].mxu0
    %655 = vdwg.mxu0
    %v656 = vmax.f32 %v638, 0.0
    %v657 = vmax.f32 %v643, 0.0
    %v658 = vmax.f32 %v648, 0.0
    %v659 = vmax.f32 %v653, 0.0
    %v660 = vld [vmem:[#allocation2 + $0x308] sm:$0xff]
    %v661 = vld [vmem:[#allocation2 + $0x310] sm:$0xff]
    %v662 = vmul.f32 %v656, %v660
    %v663 = vmul.f32 %v657, %v661
    %v664 = vmul.f32 %v658, %v660
    %v665 = vmul.f32 %v659, %v661
    %v666 = vmax.f32 %v662, %v663
    %v667 = vrot.slane %v666, 4
    %v668 = vmax.f32 %v666, %v667
    %v669 = vrot.slane %v668, 2
    %v670 = vmax.f32 %v668, %v669
    %v671 = vrot.slane %v670, 1
    %v672 = vmax.f32 %v670, %v671
    %v673 = vmax.f32 %v664, %v665
    %v674 = vrot.slane %v673, 4
    %v675 = vmax.f32 %v673, %v674
    %v676 = vrot.slane %v675, 2
    %v677 = vmax.f32 %v675, %v676
    %v678 = vrot.slane %v677, 1
    %v679 = vmax.f32 %v677, %v678
    %v680 = vld [vmem:[#allocation2 + $0x280] sm:$0xff]
    %v681 = vld [vmem:[#allocation2 + $0x288] sm:$0xff]
    %v682 = vld [vmem:[#allocation2 + $0x290] sm:$0xff]
    %v683 = vld [vmem:[#allocation2 + $0x298] sm:$0xff]
    %v684 = vld [vmem:[#allocation2 + $0x2a0] sm:$0xff]
    %v685 = vld [vmem:[#allocation2 + $0x2a8] sm:$0xff]
    %v686 = vld [vmem:[#allocation2 + $0x2b0] sm:$0xff]
    %v687 = vld [vmem:[#allocation2 + $0x2b8] sm:$0xff]
    %v688 = vld [vmem:[#allocation2 + $0x2c0] sm:$0xff]
    %v689 = vld [vmem:[#allocation2 + $0x2c8] sm:$0xff]
    %v690 = vld [vmem:[#allocation2 + $0x2d0] sm:$0xff]
    %v691 = vld [vmem:[#allocation2 + $0x2d8] sm:$0xff]
    %v692 = vld [vmem:[#allocation2 + $0x2e0] sm:$0xff]
    %v693 = vld [vmem:[#allocation2 + $0x2e8] sm:$0xff]
    %v694 = vld [vmem:[#allocation2 + $0x2f0] sm:$0xff]
    %v695 = vld [vmem:[#allocation2 + $0x2f8] sm:$0xff]
    %v696 = vlaneseq
    %v697 = vshrl.u32 %v696, 7
    %v698 = vsub.s32 1, %v697
    %v699 = vrot.slane %v396, %v698
    %vm702 = vcmask 1041409
    %v703 = vsel %vm702, %v679, %v672
    %705 = vmatprep.subr.mxu0 0.0
    %706 = vmatpush1.msra.mxu0 %v680
    %707 = vmatprep.subr.mxu0 0.0
    %708 = vmatpush1.msra.mxu0 %v681
    %709 = vmatprep.subr.mxu0 0.0
    %710 = vmatpush1.msra.mxu0 %v682
    %711 = vmatprep.subr.mxu0 0.0
    %712 = vmatpush1.msra.mxu0 %v683
    %713 = vmatprep.subr.mxu0 0.0
    %714 = vmatpush1.msra.mxu0 %v684
    %715 = vmatprep.subr.mxu0 0.0
    %716 = vmatpush1.msra.mxu0 %v685
    %717 = vmatprep.subr.mxu0 0.0
    %718 = vmatpush1.msra.mxu0 %v686
    %719 = vmatprep.subr.mxu0 0.0
    %720 = vmatpush1.msra.mxu0 %v687
    %721 = vmatprep.subr.mxu0 0.0
    %722 = vmatpush1.msra.mxu0 %v688
    %723 = vmatprep.subr.mxu0 0.0
    %724 = vmatpush1.msra.mxu0 %v689
    %725 = vmatprep.subr.mxu0 0.0
    %726 = vmatpush1.msra.mxu0 %v690
    %727 = vmatprep.subr.mxu0 0.0
    %728 = vmatpush1.msra.mxu0 %v691
    %729 = vmatprep.subr.mxu0 0.0
    %730 = vmatpush1.msra.mxu0 %v692
    %731 = vmatprep.subr.mxu0 0.0
    %732 = vmatpush1.msra.mxu0 %v693
    %733 = vmatprep.subr.mxu0 0.0
    %734 = vmatpush1.msra.mxu0 %v694
    %735 = vmatprep.subr.mxu0 0.0
    %736 = vmatpush1.msra.mxu0 %v695
    %737 = vmatprep.subr.mxu0 0.0
    %738 = vmatpush1.msra.mxu0 0.0
    %739 = vmatprep.subr.mxu0 0.0
    %740 = vmatpush1.msra.mxu0 0.0
    %741 = vmatprep.subr.mxu0 0.0
    %742 = vmatpush1.msra.mxu0 0.0
    %743 = vmatprep.subr.mxu0 0.0
    %744 = vmatpush1.msra.mxu0 0.0
    %745 = vmatprep.subr.mxu0 0.0
    %746 = vmatpush1.msra.mxu0 0.0
    %747 = vmatprep.subr.mxu0 0.0
    %748 = vmatpush1.msra.mxu0 0.0
    %749 = vmatprep.subr.mxu0 0.0
    %750 = vmatpush1.msra.mxu0 0.0
    %751 = vmatprep.subr.mxu0 0.0
    %752 = vmatpush1.msra.mxu0 0.0
    %753 = vmatprep.subr.mxu0 0.0
    %754 = vmatpush1.msra.mxu0 0.0
    %755 = vmatprep.subr.mxu0 0.0
    %756 = vmatpush1.msra.mxu0 0.0
    %757 = vmatprep.subr.mxu0 0.0
    %758 = vmatpush1.msra.mxu0 0.0
    %759 = vmatprep.subr.mxu0 0.0
    %760 = vmatpush1.msra.mxu0 0.0
    %761 = vmatprep.subr.mxu0 0.0
    %762 = vmatpush1.msra.mxu0 0.0
    %763 = vmatprep.subr.mxu0 0.0
    %764 = vmatpush1.msra.mxu0 0.0
    %765 = vmatprep.subr.mxu0 0.0
    %766 = vmatpush1.msra.mxu0 0.0
    %767 = vmatprep.subr.mxu0 0.0
    %768 = vmatpush1.msra.mxu0 0.0
    %769 = vmatprep.mubr.f32.mxu0 0.0
    %770 = vmatmul.mubr.f32.gmra.mrb[0].mxu0 %v703
    %v771 = vpop.f32.mrb[0].mxu0
    %v772 = vadd.f32 %v699, %v771
    %v773 = vpop.f32.mrb[0].mxu0
    %774 = vdwg.mxu0
    %775 = vst [vmem:[#allocation5] sm:$0x3] %v772
    // Predicated region
    $region14: #{textcnn_forward.1} parent=1 // pred_check
      _
    $region15: #{textcnn_forward.1} parent=1 // pred_check_branch
      %777 = sbr.rel (0) target = $region17
    $region16: #{textcnn_forward.1} parent=1 // pred_region
      %s779 = ssub.s32 32, 32
      %780 = vsyncadd [#allocation4], %s779
      %s782 = sshll.u32 [#allocation5], 4
      %s783 = int_to_ptr.vmem [resolvable:$true] %s782
      %785 = dma.vmem_to_hbm [thread:$0]  %s783, 32, %s2, [#allocation4]
    $region17: #{textcnn_forward.1} parent=1 // pred_fallthru
      _
    // Predicated region
    $region18: #{textcnn_forward.1} parent=1 // pred_check
      _
    $region19: #{textcnn_forward.1} parent=1 // pred_check_branch
      %787 = sbr.rel (0) target = $region21
    $region20: #{textcnn_forward.1} parent=1 // pred_region
      %788 = dma.done [#allocation4], 32
    $region21: #{textcnn_forward.1} parent=1 // pred_fallthru
      _
    %789 = vsyncpa [#allocation3], 1
    %790 = vsyncpa [#allocation4], 1

</llo_original>
